<compile_context>
chip_gen: v5e
topology: v5e:2x2
jax: 0.10.0
libtpu: 0.0.40
codegen_flags: <defaults>
</compile_context>

<pallas_src>
import jax
import jax.numpy as jnp
import numpy as np
from jax import lax
from jax.experimental import pallas as pl
from jax.experimental.pallas import tpu as pltpu


def _pixel_perfect_kernel(x_ref, idxk_ref, topk_ref, idxn_ref,
                          vals_scr, tv_scr, ti_scr, rowmax_scr, sel_scr):
    # Static shapes:
    #   x_ref     : (1, 1, C, L)  one lane-chunk of the flattened image
    #   tv_scr    : (R, k, L) f32 per-pixel top-k channel values
    #   ti_scr    : (R, k, L) i32 per-pixel top-k channel indices
    #   vals_scr  : (R, 1, L) f32 working per-pixel channel max (invalidated)
    #   rowmax_scr: (1, R)   f32 running max of every chunk
    #   sel_scr   : (1, 1)   i32 vector->scalar round trip for the chunk id
    C, L = x_ref.shape[2], x_ref.shape[3]
    R, k = tv_scr.shape[0], tv_scr.shape[1]
    n = idxn_ref.shape[2]

    r = pl.program_id(1)
    lane_R = lax.broadcasted_iota(jnp.int32, (1, R), 1)

    # ---------- stage 1: per-pixel top-k over channels for this L-wide chunk ----------
    # NOTE: values assumed to contain no -inf (sentinel used for invalidation).
    work = x_ref[0, 0].astype(jnp.float32)                         # (C, L)
    ch_iota = lax.broadcasted_iota(jnp.int32, (C, L), 0)
    tv_rows, ti_rows = [], []
    for j in range(k):
        m = jnp.max(work, axis=0, keepdims=True)                   # (1, L)
        idx = jnp.min(jnp.where(work == m, ch_iota, C),
                      axis=0, keepdims=True)                       # (1, L) first occurrence
        tv_rows.append(m)
        ti_rows.append(idx)
        if j + 1 < k:
            work = jnp.where(ch_iota == idx, -jnp.inf, work)

    tv_scr[r] = jnp.concatenate(tv_rows, axis=0)                   # (k, L)
    ti_scr[r] = jnp.concatenate(ti_rows, axis=0)                   # (k, L)
    # MaxPool3d((3,1,1), stride=1, ceil) over k with k==3 == per-pixel channel max == row 0.
    vals_scr[r] = tv_rows[0]                                       # (1, L)
    chunk_max = jnp.max(tv_rows[0], axis=1, keepdims=True)         # (1, 1)
    rowmax_scr[...] = jnp.where(lane_R == r, chunk_max, rowmax_scr[...])

    # ---------- stage 2: after the last chunk, top-n pixels + fused gather ----------
    @pl.when(r == R - 1)
    def _():
        lane_L = lax.broadcasted_iota(jnp.int32, (1, L), 1)
        lane_n = lax.broadcasted_iota(jnp.int32, (1, n), 1)

        idxn_ref[0] = jnp.zeros((1, n), jnp.int32)
        topk_ref[0] = jnp.zeros((k, n), topk_ref.dtype)
        idxk_ref[0] = jnp.zeros((k, n), jnp.float32)

        def body(t, carry):
            # level 1: which chunk holds the best remaining pixel (ties -> lowest chunk)
            rowmax = rowmax_scr[...]                               # (1, R)
            gm = jnp.max(rowmax, axis=1, keepdims=True)            # (1, 1)
            rvec = jnp.min(jnp.where(rowmax == gm, lane_R, R),
                           axis=1, keepdims=True)                  # (1, 1) i32
            sel_scr[...] = rvec
            rr = sel_scr[0, 0]                                     # scalar chunk id

            # level 2: which lane inside that chunk (ties -> lowest lane)
            row = vals_scr[rr]                                     # (1, L)
            cvec = jnp.min(jnp.where(row == gm, lane_L, L),
                           axis=1, keepdims=True)                  # (1, 1) i32
            lane_mask = lane_L == cvec                             # (1, L)

            # fused gather of the k values / channel indices at the selected pixel
            tvr = tv_scr[rr]                                       # (k, L)
            tir = ti_scr[rr]                                       # (k, L)
            gv = jnp.max(jnp.where(lane_mask, tvr, -jnp.inf),
                         axis=1, keepdims=True)                    # (k, 1)
            gi = jnp.sum(jnp.where(lane_mask, tir.astype(jnp.float32), 0.0),
                         axis=1, keepdims=True)                    # (k, 1), exact: C < 2^24

            flat = rvec * L + cvec                                 # (1, 1) flat pixel index

            colmask = lane_n == t                                  # (1, n)
            idxn_ref[0] = jnp.where(colmask, flat, idxn_ref[0])
            topk_ref[0] = jnp.where(colmask, gv.astype(topk_ref.dtype), topk_ref[0])
            idxk_ref[0] = jnp.where(colmask, gi, idxk_ref[0])

            # invalidate the selected pixel; refresh only that chunk's running max
            new_row = jnp.where(lane_mask, -jnp.inf, row)          # (1, L)
            vals_scr[rr] = new_row
            new_rm = jnp.max(new_row, axis=1, keepdims=True)       # (1, 1)
            rowmax_scr[...] = jnp.where(lane_R == rvec, new_rm, rowmax)
            return carry

        lax.fori_loop(0, n, body, 0)


def _pick_chunk_lanes(hw):
    """Smallest multiple-of-128 divisor of hw with at most 64 chunks (grid steps)."""
    best = None
    l = 128
    while l <= hw:
        if hw % l == 0:
            if best is None:
                best = l
            if hw // l <= 64:
                return l
        l += 128
    return best if best is not None else hw


def pixel_perfect(x, n_features=128, k_vals=3, chunk_lanes=None):
    B, C, H, W = x.shape
    HW = H * W
    assert k_vals == 3, "MaxPool3d((3,1,1)) reduction implemented for the default k_vals == 3"
    assert k_vals <= C and n_features <= HW
    assert C < (1 << 24), "channel indices must be exactly representable in f32"

    L = _pick_chunk_lanes(HW) if chunk_lanes is None else chunk_lanes
    assert HW % L == 0
    R = HW // L

    # (B, C, H, W) -> (B, R, C, L): chunk the flattened pixel axis (flat pixel = r*L + c).
    # Layout plumbing done by XLA outside the kernel; per grid step only one (C, L) slab
    # lives in VMEM (double-buffered), keeping well under the v7x 64 MiB budget.
    x_r = jnp.transpose(x.reshape(B, C, R, L), (0, 2, 1, 3))

    out_shapes = (
        jax.ShapeDtypeStruct((B, k_vals, n_features), jnp.float32),   # reduced_idxk
        jax.ShapeDtypeStruct((B, k_vals, n_features), x.dtype),       # reduced_topk
        jax.ShapeDtypeStruct((B, 1, n_features), jnp.int32),          # idxn
    )

    grid_spec = pltpu.PrefetchScalarGridSpec(
        num_scalar_prefetch=0,
        grid=(B, R),
        in_specs=[pl.BlockSpec((1, 1, C, L), lambda b, r: (b, r, 0, 0))],
        out_specs=[
            pl.BlockSpec((1, k_vals, n_features), lambda b, r: (b, 0, 0)),
            pl.BlockSpec((1, k_vals, n_features), lambda b, r: (b, 0, 0)),
            pl.BlockSpec((1, 1, n_features), lambda b, r: (b, 0, 0)),
        ],
        scratch_shapes=[
            pltpu.VMEM((R, 1, L), jnp.float32),        # vals_scr (working channel max)
            pltpu.VMEM((R, k_vals, L), jnp.float32),   # tv_scr
            pltpu.VMEM((R, k_vals, L), jnp.int32),     # ti_scr
            pltpu.VMEM((1, R), jnp.float32),           # rowmax_scr
            pltpu.VMEM((1, 1), jnp.int32),             # sel_scr
        ],
    )

    return pl.pallas_call(
        _pixel_perfect_kernel,
        out_shape=out_shapes,
        grid_spec=grid_spec,
        compiler_params=pltpu.CompilerParams(
            dimension_semantics=("parallel", "arbitrary")),
    )(x_r)


def _reference(x, n_features, k_vals):
    """Pure-JAX reference of the PyTorch forward (values assumed distinct)."""
    B, C, H, W = x.shape
    xc = jnp.transpose(x, (0, 2, 3, 1))                               # (B,H,W,C)
    tv, ti = jax.lax.top_k(xc, k_vals)                                # (B,H,W,k)
    tv = jnp.transpose(tv, (0, 3, 1, 2)).reshape(B, k_vals, H * W)
    ti = jnp.transpose(ti, (0, 3, 1, 2)).reshape(B, k_vals, H * W)
    _, idxn = jax.lax.top_k(tv[:, 0, :], n_features)                  # (B, n)
    red_topk = jnp.take_along_axis(tv, idxn[:, None, :], axis=2)
    red_idxk = jnp.take_along_axis(ti, idxn[:, None, :], axis=2).astype(jnp.float32)
    return red_idxk, red_topk, idxn[:, None, :]


if __name__ == "__main__":
    key = jax.random.PRNGKey(0)
    B, C, H, W = 2, 4, 32, 32
    n_features, k_vals = 128, 3        # lane-dense output width (multiple of 128)

    x = jax.random.normal(key, (B, C, H, W), dtype=jnp.float32)

    red_idxk, red_topk, idxn = pixel_perfect(x, n_features=n_features, k_vals=k_vals)
    jax.block_until_ready((red_idxk, red_topk, idxn))

    ri_ref, rt_ref, ix_ref = _reference(x, n_features, k_vals)
    np.testing.assert_array_equal(np.asarray(idxn), np.asarray(ix_ref))
    np.testing.assert_allclose(np.asarray(red_topk), np.asarray(rt_ref), rtol=1e-6, atol=1e-6)
    np.testing.assert_allclose(np.asarray(red_idxk), np.asarray(ri_ref), rtol=0, atol=0)

    print("KERNEL_OK")
</pallas_src>

<mosaic_0001>
module attributes {stable_mosaic.version = 11 : i64} {
  func.func @_pixel_perfect_kernel(%arg0: i32, %arg1: i32, %arg2: memref<1x1x4x128xf32, #tpu.memory_space<vmem>>, %arg3: memref<1x3x128xf32, #tpu.memory_space<vmem>>, %arg4: memref<1x3x128xf32, #tpu.memory_space<vmem>>, %arg5: memref<1x1x128xi32, #tpu.memory_space<vmem>>, %arg6: memref<8x1x128xf32, #tpu.memory_space<vmem>>, %arg7: memref<8x3x128xf32, #tpu.memory_space<vmem>>, %arg8: memref<8x3x128xi32, #tpu.memory_space<vmem>>, %arg9: memref<1x8xf32, #tpu.memory_space<vmem>>, %arg10: memref<1x1xi32, #tpu.memory_space<vmem>>) attributes {dimension_semantics = [#tpu.dimension_semantics<parallel>, #tpu.dimension_semantics<arbitrary>], iteration_bounds = array<i64: 2, 8>, scalar_prefetch = 0 : i64, scratch_operands = 5 : i64, tpu.core_type = #tpu.core_type<tc>, window_params = [{transform_indices = @transform_0, window_bounds = array<i64: 1, 1, 4, 128>}, {transform_indices = @transform_1, window_bounds = array<i64: 1, 3, 128>}, {transform_indices = @transform_2, window_bounds = array<i64: 1, 3, 128>}, {transform_indices = @transform_3, window_bounds = array<i64: 1, 1, 128>}]} {
    %0 = tpu.iota {dimensions = array<i32: 1>} : vector<1x8xi32>
    %c0 = arith.constant 0 : index
    %c0_0 = arith.constant 0 : index
    %c0_1 = arith.constant 0 : index
    %c0_2 = arith.constant 0 : index
    %1 = vector.load %arg2[%c0, %c0_0, %c0_1, %c0_2] : memref<1x1x4x128xf32, #tpu.memory_space<vmem>>, vector<1x1x4x128xf32>
    %2 = vector.shape_cast %1 : vector<1x1x4x128xf32> to vector<4x128xf32>
    %3 = tpu.iota {dimensions = array<i32: 0>} : vector<4x128xi32>
    %cst = arith.constant dense<0xFF800000> : vector<128xf32>
    %4 = vector.multi_reduction <maximumf>, %2, %cst [0] : vector<4x128xf32> to vector<128xf32>
    %5 = vector.shape_cast %4 : vector<128xf32> to vector<1x128xf32>
    %6 = vector.broadcast %5 : vector<1x128xf32> to vector<4x128xf32>
    %7 = arith.cmpf oeq, %2, %6 : vector<4x128xf32>
    %c4_i32 = arith.constant 4 : i32
    %8 = vector.broadcast %c4_i32 : i32 to vector<4x128xi32>
    %9 = arith.select %7, %3, %8 : vector<4x128xi1>, vector<4x128xi32>
    %cst_3 = arith.constant dense<2147483647> : vector<128xi32>
    %10 = vector.multi_reduction <minsi>, %9, %cst_3 [0] : vector<4x128xi32> to vector<128xi32>
    %11 = vector.shape_cast %10 : vector<128xi32> to vector<1x128xi32>
    %12 = vector.broadcast %11 : vector<1x128xi32> to vector<4x128xi32>
    %13 = arith.cmpi eq, %3, %12 : vector<4x128xi32>
    %cst_4 = arith.constant 0xFF800000 : f32
    %14 = vector.broadcast %cst_4 : f32 to vector<4x128xf32>
    %15 = arith.select %13, %14, %2 : vector<4x128xi1>, vector<4x128xf32>
    %cst_5 = arith.constant dense<0xFF800000> : vector<128xf32>
    %16 = vector.multi_reduction <maximumf>, %15, %cst_5 [0] : vector<4x128xf32> to vector<128xf32>
    %17 = vector.shape_cast %16 : vector<128xf32> to vector<1x128xf32>
    %18 = vector.broadcast %17 : vector<1x128xf32> to vector<4x128xf32>
    %19 = arith.cmpf oeq, %15, %18 : vector<4x128xf32>
    %c4_i32_6 = arith.constant 4 : i32
    %20 = vector.broadcast %c4_i32_6 : i32 to vector<4x128xi32>
    %21 = arith.select %19, %3, %20 : vector<4x128xi1>, vector<4x128xi32>
    %cst_7 = arith.constant dense<2147483647> : vector<128xi32>
    %22 = vector.multi_reduction <minsi>, %21, %cst_7 [0] : vector<4x128xi32> to vector<128xi32>
    %23 = vector.shape_cast %22 : vector<128xi32> to vector<1x128xi32>
    %24 = vector.broadcast %23 : vector<1x128xi32> to vector<4x128xi32>
    %25 = arith.cmpi eq, %3, %24 : vector<4x128xi32>
    %cst_8 = arith.constant 0xFF800000 : f32
    %26 = vector.broadcast %cst_8 : f32 to vector<4x128xf32>
    %27 = arith.select %25, %26, %15 : vector<4x128xi1>, vector<4x128xf32>
    %cst_9 = arith.constant dense<0xFF800000> : vector<128xf32>
    %28 = vector.multi_reduction <maximumf>, %27, %cst_9 [0] : vector<4x128xf32> to vector<128xf32>
    %29 = vector.shape_cast %28 : vector<128xf32> to vector<1x128xf32>
    %30 = vector.broadcast %29 : vector<1x128xf32> to vector<4x128xf32>
    %31 = arith.cmpf oeq, %27, %30 : vector<4x128xf32>
    %c4_i32_10 = arith.constant 4 : i32
    %32 = vector.broadcast %c4_i32_10 : i32 to vector<4x128xi32>
    %33 = arith.select %31, %3, %32 : vector<4x128xi1>, vector<4x128xi32>
    %cst_11 = arith.constant dense<2147483647> : vector<128xi32>
    %34 = vector.multi_reduction <minsi>, %33, %cst_11 [0] : vector<4x128xi32> to vector<128xi32>
    %35 = vector.shape_cast %34 : vector<128xi32> to vector<1x128xi32>
    %36 = tpu.concatenate %5, %17, %29 in 0 : vector<1x128xf32>, vector<1x128xf32>, vector<1x128xf32> -> vector<3x128xf32>
    %37 = arith.index_cast %arg1 : i32 to index
    %c0_12 = arith.constant 0 : index
    %c0_13 = arith.constant 0 : index
    %38 = vector.load %arg7[%37, %c0_12, %c0_13] : memref<8x3x128xf32, #tpu.memory_space<vmem>>, vector<1x3x128xf32>
    %39 = vector.shape_cast %38 : vector<1x3x128xf32> to vector<3x128xf32>
    %40 = vector.shape_cast %36 : vector<3x128xf32> to vector<1x3x128xf32>
    tpu.vector_store %arg7[%37, %c0_12, %c0_13], %40 {strides = array<i32>} : memref<8x3x128xf32, #tpu.memory_space<vmem>>, vector<1x3x128xf32>,
    %41 = tpu.concatenate %11, %23, %35 in 0 : vector<1x128xi32>, vector<1x128xi32>, vector<1x128xi32> -> vector<3x128xi32>
    %42 = arith.index_cast %arg1 : i32 to index
    %c0_14 = arith.constant 0 : index
    %c0_15 = arith.constant 0 : index
    %43 = vector.load %arg8[%42, %c0_14, %c0_15] : memref<8x3x128xi32, #tpu.memory_space<vmem>>, vector<1x3x128xi32>
    %44 = vector.shape_cast %43 : vector<1x3x128xi32> to vector<3x128xi32>
    %45 = vector.shape_cast %41 : vector<3x128xi32> to vector<1x3x128xi32>
    tpu.vector_store %arg8[%42, %c0_14, %c0_15], %45 {strides = array<i32>} : memref<8x3x128xi32, #tpu.memory_space<vmem>>, vector<1x3x128xi32>,
    %46 = arith.index_cast %arg1 : i32 to index
    %c0_16 = arith.constant 0 : index
    %c0_17 = arith.constant 0 : index
    %47 = vector.load %arg6[%46, %c0_16, %c0_17] : memref<8x1x128xf32, #tpu.memory_space<vmem>>, vector<1x1x128xf32>
    %48 = vector.shape_cast %47 : vector<1x1x128xf32> to vector<1x128xf32>
    %49 = vector.shape_cast %5 : vector<1x128xf32> to vector<1x1x128xf32>
    tpu.vector_store %arg6[%46, %c0_16, %c0_17], %49 {strides = array<i32>} : memref<8x1x128xf32, #tpu.memory_space<vmem>>, vector<1x1x128xf32>,
    %cst_18 = arith.constant dense<0xFF800000> : vector<1xf32>
    %50 = vector.multi_reduction <maximumf>, %5, %cst_18 [1] : vector<1x128xf32> to vector<1xf32>
    %51 = vector.shape_cast %50 : vector<1xf32> to vector<1x1xf32>
    %52 = vector.broadcast %arg1 : i32 to vector<1x8xi32>
    %53 = arith.cmpi eq, %0, %52 : vector<1x8xi32>
    %c0_19 = arith.constant 0 : index
    %c0_20 = arith.constant 0 : index
    %54 = vector.load %arg9[%c0_19, %c0_20] : memref<1x8xf32, #tpu.memory_space<vmem>>, vector<1x8xf32>
    %55 = vector.shape_cast %51 : vector<1x1xf32> to vector<1x1xf32>
    %56 = vector.broadcast %55 : vector<1x1xf32> to vector<1x8xf32>
    %57 = arith.select %53, %56, %54 : vector<1x8xi1>, vector<1x8xf32>
    %c0_21 = arith.constant 0 : index
    %c0_22 = arith.constant 0 : index
    %58 = vector.load %arg9[%c0_21, %c0_22] : memref<1x8xf32, #tpu.memory_space<vmem>>, vector<1x8xf32>
    tpu.vector_store %arg9[%c0_21, %c0_22], %57 {strides = array<i32>} : memref<1x8xf32, #tpu.memory_space<vmem>>, vector<1x8xf32>,
    %c7_i32 = arith.constant 7 : i32
    %59 = arith.cmpi eq, %arg1, %c7_i32 : i32
    %60 = arith.extui %59 : i1 to i32
    %c0_i32 = arith.constant 0 : i32
    %61 = arith.cmpi ne, %60, %c0_i32 : i32
    scf.if %61 {
      %62 = tpu.iota {dimensions = array<i32: 1>} : vector<1x128xi32>
      %63 = tpu.iota {dimensions = array<i32: 1>} : vector<1x128xi32>
      %c0_i32_23 = arith.constant 0 : i32
      %64 = vector.broadcast %c0_i32_23 : i32 to vector<1x128xi32>
      %c0_24 = arith.constant 0 : index
      %c0_25 = arith.constant 0 : index
      %c0_26 = arith.constant 0 : index
      %65 = vector.load %arg5[%c0_24, %c0_25, %c0_26] : memref<1x1x128xi32, #tpu.memory_space<vmem>>, vector<1x1x128xi32>
      %66 = vector.shape_cast %65 : vector<1x1x128xi32> to vector<1x128xi32>
      %67 = vector.shape_cast %64 : vector<1x128xi32> to vector<1x1x128xi32>
      tpu.vector_store %arg5[%c0_24, %c0_25, %c0_26], %67 {strides = array<i32>} : memref<1x1x128xi32, #tpu.memory_space<vmem>>, vector<1x1x128xi32>,
      %cst_27 = arith.constant 0.000000e+00 : f32
      %68 = vector.broadcast %cst_27 : f32 to vector<3x128xf32>
      %c0_28 = arith.constant 0 : index
      %c0_29 = arith.constant 0 : index
      %c0_30 = arith.constant 0 : index
      %69 = vector.load %arg4[%c0_28, %c0_29, %c0_30] : memref<1x3x128xf32, #tpu.memory_space<vmem>>, vector<1x3x128xf32>
      %70 = vector.shape_cast %69 : vector<1x3x128xf32> to vector<3x128xf32>
      %71 = vector.shape_cast %68 : vector<3x128xf32> to vector<1x3x128xf32>
      tpu.vector_store %arg4[%c0_28, %c0_29, %c0_30], %71 {strides = array<i32>} : memref<1x3x128xf32, #tpu.memory_space<vmem>>, vector<1x3x128xf32>,
      %cst_31 = arith.constant 0.000000e+00 : f32
      %72 = vector.broadcast %cst_31 : f32 to vector<3x128xf32>
      %c0_32 = arith.constant 0 : index
      %c0_33 = arith.constant 0 : index
      %c0_34 = arith.constant 0 : index
      %73 = vector.load %arg3[%c0_32, %c0_33, %c0_34] : memref<1x3x128xf32, #tpu.memory_space<vmem>>, vector<1x3x128xf32>
      %74 = vector.shape_cast %73 : vector<1x3x128xf32> to vector<3x128xf32>
      %75 = vector.shape_cast %72 : vector<3x128xf32> to vector<1x3x128xf32>
      tpu.vector_store %arg3[%c0_32, %c0_33, %c0_34], %75 {strides = array<i32>} : memref<1x3x128xf32, #tpu.memory_space<vmem>>, vector<1x3x128xf32>,
      %c0_i32_35 = arith.constant 0 : i32
      %c128_i32 = arith.constant 128 : i32
      %76 = arith.addi %c0_i32_35, %c128_i32 : i32
      %c1_i32 = arith.constant 1 : i32
      scf.for %arg11 = %c0_i32_35 to %76 step %c1_i32  : i32 {
        %c0_37 = arith.constant 0 : index
        %c0_38 = arith.constant 0 : index
        %77 = vector.load %arg9[%c0_37, %c0_38] : memref<1x8xf32, #tpu.memory_space<vmem>>, vector<1x8xf32>
        %cst_39 = arith.constant dense<0xFF800000> : vector<1xf32>
        %78 = vector.multi_reduction <maximumf>, %77, %cst_39 [1] : vector<1x8xf32> to vector<1xf32>
        %79 = vector.shape_cast %78 : vector<1xf32> to vector<1x1xf32>
        %80 = vector.broadcast %79 : vector<1x1xf32> to vector<1x8xf32>
        %81 = arith.cmpf oeq, %77, %80 : vector<1x8xf32>
        %c8_i32 = arith.constant 8 : i32
        %82 = vector.broadcast %c8_i32 : i32 to vector<1x8xi32>
        %83 = arith.select %81, %0, %82 : vector<1x8xi1>, vector<1x8xi32>
        %cst_40 = arith.constant dense<2147483647> : vector<1xi32>
        %84 = vector.multi_reduction <minsi>, %83, %cst_40 [1] : vector<1x8xi32> to vector<1xi32>
        %85 = vector.shape_cast %84 : vector<1xi32> to vector<1x1xi32>
        %c0_41 = arith.constant 0 : index
        %c0_42 = arith.constant 0 : index
        %86 = vector.load %arg10[%c0_41, %c0_42] : memref<1x1xi32, #tpu.memory_space<vmem>>, vector<1x1xi32>
        tpu.vector_store %arg10[%c0_41, %c0_42], %85 {strides = array<i32>} : memref<1x1xi32, #tpu.memory_space<vmem>>, vector<1x1xi32>,
        %c0_43 = arith.constant 0 : index
        %c0_44 = arith.constant 0 : index
        %87 = vector.load %arg10[%c0_43, %c0_44] : memref<1x1xi32, #tpu.memory_space<vmem>>, vector<1x1xi32>
        %88 = vector.extract %87[0, 0] : i32 from vector<1x1xi32>
        %89 = arith.index_cast %88 : i32 to index
        %c0_45 = arith.constant 0 : index
        %c0_46 = arith.constant 0 : index
        %90 = vector.load %arg6[%89, %c0_45, %c0_46] : memref<8x1x128xf32, #tpu.memory_space<vmem>>, vector<1x1x128xf32>
        %91 = vector.shape_cast %90 : vector<1x1x128xf32> to vector<1x128xf32>
        %92 = vector.broadcast %79 : vector<1x1xf32> to vector<1x128xf32>
        %93 = arith.cmpf oeq, %91, %92 : vector<1x128xf32>
        %c128_i32_47 = arith.constant 128 : i32
        %94 = vector.broadcast %c128_i32_47 : i32 to vector<1x128xi32>
        %95 = arith.select %93, %62, %94 : vector<1x128xi1>, vector<1x128xi32>
        %cst_48 = arith.constant dense<2147483647> : vector<1xi32>
        %96 = vector.multi_reduction <minsi>, %95, %cst_48 [1] : vector<1x128xi32> to vector<1xi32>
        %97 = vector.shape_cast %96 : vector<1xi32> to vector<1x1xi32>
        %98 = vector.broadcast %97 : vector<1x1xi32> to vector<1x128xi32>
        %99 = arith.cmpi eq, %62, %98 : vector<1x128xi32>
        %100 = arith.index_cast %88 : i32 to index
        %c0_49 = arith.constant 0 : index
        %c0_50 = arith.constant 0 : index
        %101 = vector.load %arg7[%100, %c0_49, %c0_50] : memref<8x3x128xf32, #tpu.memory_space<vmem>>, vector<1x3x128xf32>
        %102 = vector.shape_cast %101 : vector<1x3x128xf32> to vector<3x128xf32>
        %103 = arith.index_cast %88 : i32 to index
        %c0_51 = arith.constant 0 : index
        %c0_52 = arith.constant 0 : index
        %104 = vector.load %arg8[%103, %c0_51, %c0_52] : memref<8x3x128xi32, #tpu.memory_space<vmem>>, vector<1x3x128xi32>
        %105 = vector.shape_cast %104 : vector<1x3x128xi32> to vector<3x128xi32>
        %cst_53 = arith.constant 0xFF800000 : f32
        %106 = vector.shape_cast %99 : vector<1x128xi1> to vector<1x128xi1>
        %107 = vector.broadcast %106 : vector<1x128xi1> to vector<3x128xi1>
        %108 = vector.broadcast %cst_53 : f32 to vector<3x128xf32>
        %109 = arith.select %107, %102, %108 : vector<3x128xi1>, vector<3x128xf32>
        %cst_54 = arith.constant dense<0xFF800000> : vector<3xf32>
        %110 = vector.multi_reduction <maximumf>, %109, %cst_54 [1] : vector<3x128xf32> to vector<3xf32>
        %111 = vector.shape_cast %110 : vector<3xf32> to vector<3x1xf32>
        %112 = arith.sitofp %105 : vector<3x128xi32> to vector<3x128xf32>
        %cst_55 = arith.constant 0.000000e+00 : f32
        %113 = vector.shape_cast %99 : vector<1x128xi1> to vector<1x128xi1>
        %114 = vector.broadcast %113 : vector<1x128xi1> to vector<3x128xi1>
        %115 = vector.broadcast %cst_55 : f32 to vector<3x128xf32>
        %116 = arith.select %114, %112, %115 : vector<3x128xi1>, vector<3x128xf32>
        %cst_56 = arith.constant dense<0.000000e+00> : vector<3xf32>
        %117 = vector.multi_reduction <add>, %116, %cst_56 [1] : vector<3x128xf32> to vector<3xf32>
        %118 = vector.shape_cast %117 : vector<3xf32> to vector<3x1xf32>
        %c128_i32_57 = arith.constant 128 : i32
        %119 = vector.broadcast %c128_i32_57 : i32 to vector<1x1xi32>
        %120 = arith.muli %85, %119 : vector<1x1xi32>
        %121 = arith.addi %120, %97 : vector<1x1xi32>
        %122 = vector.broadcast %arg11 : i32 to vector<1x128xi32>
        %123 = arith.cmpi eq, %63, %122 : vector<1x128xi32>
        %c0_58 = arith.constant 0 : index
        %c0_59 = arith.constant 0 : index
        %c0_60 = arith.constant 0 : index
        %124 = vector.load %arg5[%c0_58, %c0_59, %c0_60] : memref<1x1x128xi32, #tpu.memory_space<vmem>>, vector<1x1x128xi32>
        %125 = vector.shape_cast %124 : vector<1x1x128xi32> to vector<1x128xi32>
        %126 = vector.shape_cast %121 : vector<1x1xi32> to vector<1x1xi32>
        %127 = vector.broadcast %126 : vector<1x1xi32> to vector<1x128xi32>
        %128 = arith.select %123, %127, %125 : vector<1x128xi1>, vector<1x128xi32>
        %c0_61 = arith.constant 0 : index
        %c0_62 = arith.constant 0 : index
        %c0_63 = arith.constant 0 : index
        %129 = vector.load %arg5[%c0_61, %c0_62, %c0_63] : memref<1x1x128xi32, #tpu.memory_space<vmem>>, vector<1x1x128xi32>
        %130 = vector.shape_cast %129 : vector<1x1x128xi32> to vector<1x128xi32>
        %131 = vector.shape_cast %128 : vector<1x128xi32> to vector<1x1x128xi32>
        tpu.vector_store %arg5[%c0_61, %c0_62, %c0_63], %131 {strides = array<i32>} : memref<1x1x128xi32, #tpu.memory_space<vmem>>, vector<1x1x128xi32>,
        %c0_64 = arith.constant 0 : index
        %c0_65 = arith.constant 0 : index
        %c0_66 = arith.constant 0 : index
        %132 = vector.load %arg4[%c0_64, %c0_65, %c0_66] : memref<1x3x128xf32, #tpu.memory_space<vmem>>, vector<1x3x128xf32>
        %133 = vector.shape_cast %132 : vector<1x3x128xf32> to vector<3x128xf32>
        %134 = vector.shape_cast %123 : vector<1x128xi1> to vector<1x128xi1>
        %135 = vector.broadcast %134 : vector<1x128xi1> to vector<3x128xi1>
        %136 = vector.shape_cast %111 : vector<3x1xf32> to vector<3x1xf32>
        %137 = vector.broadcast %136 : vector<3x1xf32> to vector<3x128xf32>
        %138 = arith.select %135, %137, %133 : vector<3x128xi1>, vector<3x128xf32>
        %c0_67 = arith.constant 0 : index
        %c0_68 = arith.constant 0 : index
        %c0_69 = arith.constant 0 : index
        %139 = vector.load %arg4[%c0_67, %c0_68, %c0_69] : memref<1x3x128xf32, #tpu.memory_space<vmem>>, vector<1x3x128xf32>
        %140 = vector.shape_cast %139 : vector<1x3x128xf32> to vector<3x128xf32>
        %141 = vector.shape_cast %138 : vector<3x128xf32> to vector<1x3x128xf32>
        tpu.vector_store %arg4[%c0_67, %c0_68, %c0_69], %141 {strides = array<i32>} : memref<1x3x128xf32, #tpu.memory_space<vmem>>, vector<1x3x128xf32>,
        %c0_70 = arith.constant 0 : index
        %c0_71 = arith.constant 0 : index
        %c0_72 = arith.constant 0 : index
        %142 = vector.load %arg3[%c0_70, %c0_71, %c0_72] : memref<1x3x128xf32, #tpu.memory_space<vmem>>, vector<1x3x128xf32>
        %143 = vector.shape_cast %142 : vector<1x3x128xf32> to vector<3x128xf32>
        %144 = vector.shape_cast %123 : vector<1x128xi1> to vector<1x128xi1>
        %145 = vector.broadcast %144 : vector<1x128xi1> to vector<3x128xi1>
        %146 = vector.shape_cast %118 : vector<3x1xf32> to vector<3x1xf32>
        %147 = vector.broadcast %146 : vector<3x1xf32> to vector<3x128xf32>
        %148 = arith.select %145, %147, %143 : vector<3x128xi1>, vector<3x128xf32>
        %c0_73 = arith.constant 0 : index
        %c0_74 = arith.constant 0 : index
        %c0_75 = arith.constant 0 : index
        %149 = vector.load %arg3[%c0_73, %c0_74, %c0_75] : memref<1x3x128xf32, #tpu.memory_space<vmem>>, vector<1x3x128xf32>
        %150 = vector.shape_cast %149 : vector<1x3x128xf32> to vector<3x128xf32>
        %151 = vector.shape_cast %148 : vector<3x128xf32> to vector<1x3x128xf32>
        tpu.vector_store %arg3[%c0_73, %c0_74, %c0_75], %151 {strides = array<i32>} : memref<1x3x128xf32, #tpu.memory_space<vmem>>, vector<1x3x128xf32>,
        %cst_76 = arith.constant 0xFF800000 : f32
        %152 = vector.broadcast %cst_76 : f32 to vector<1x128xf32>
        %153 = arith.select %99, %152, %91 : vector<1x128xi1>, vector<1x128xf32>
        %154 = arith.index_cast %88 : i32 to index
        %c0_77 = arith.constant 0 : index
        %c0_78 = arith.constant 0 : index
        %155 = vector.load %arg6[%154, %c0_77, %c0_78] : memref<8x1x128xf32, #tpu.memory_space<vmem>>, vector<1x1x128xf32>
        %156 = vector.shape_cast %155 : vector<1x1x128xf32> to vector<1x128xf32>
        %157 = vector.shape_cast %153 : vector<1x128xf32> to vector<1x1x128xf32>
        tpu.vector_store %arg6[%154, %c0_77, %c0_78], %157 {strides = array<i32>} : memref<8x1x128xf32, #tpu.memory_space<vmem>>, vector<1x1x128xf32>,
        %cst_79 = arith.constant dense<0xFF800000> : vector<1xf32>
        %158 = vector.multi_reduction <maximumf>, %153, %cst_79 [1] : vector<1x128xf32> to vector<1xf32>
        %159 = vector.shape_cast %158 : vector<1xf32> to vector<1x1xf32>
        %160 = vector.broadcast %85 : vector<1x1xi32> to vector<1x8xi32>
        %161 = arith.cmpi eq, %0, %160 : vector<1x8xi32>
        %162 = vector.shape_cast %159 : vector<1x1xf32> to vector<1x1xf32>
        %163 = vector.broadcast %162 : vector<1x1xf32> to vector<1x8xf32>
        %164 = arith.select %161, %163, %77 : vector<1x8xi1>, vector<1x8xf32>
        %c0_80 = arith.constant 0 : index
        %c0_81 = arith.constant 0 : index
        %165 = vector.load %arg9[%c0_80, %c0_81] : memref<1x8xf32, #tpu.memory_space<vmem>>, vector<1x8xf32>
        tpu.vector_store %arg9[%c0_80, %c0_81], %164 {strides = array<i32>} : memref<1x8xf32, #tpu.memory_space<vmem>>, vector<1x8xf32>,
      }
      %c128_i32_36 = arith.constant 128 : i32
    } else {
    }
    return
  }
  func.func @transform_0(%arg0: i32, %arg1: i32) -> (i32, i32, i32, i32) {
    %c0_i32 = arith.constant 0 : i32
    %c0_i32_0 = arith.constant 0 : i32
    %c0_i32_1 = arith.constant 0 : i32
    return %arg0, %arg1, %c0_i32, %c0_i32_0 : i32, i32, i32, i32
  }
  func.func @transform_1(%arg0: i32, %arg1: i32) -> (i32, i32, i32) {
    %c0_i32 = arith.constant 0 : i32
    %c0_i32_0 = arith.constant 0 : i32
    %c0_i32_1 = arith.constant 0 : i32
    return %arg0, %c0_i32, %c0_i32_0 : i32, i32, i32
  }
  func.func @transform_2(%arg0: i32, %arg1: i32) -> (i32, i32, i32) {
    %c0_i32 = arith.constant 0 : i32
    %c0_i32_0 = arith.constant 0 : i32
    %c0_i32_1 = arith.constant 0 : i32
    return %arg0, %c0_i32, %c0_i32_0 : i32, i32, i32
  }
  func.func @transform_3(%arg0: i32, %arg1: i32) -> (i32, i32, i32) {
    %c0_i32 = arith.constant 0 : i32
    %c0_i32_0 = arith.constant 0 : i32
    %c0_i32_1 = arith.constant 0 : i32
    return %arg0, %c0_i32, %c0_i32_0 : i32, i32, i32
  }
}

</mosaic_0001>

<llo_original>
// kernel: tpu_custom_call.1
$region0: #{tpu_custom_call.1}
  #allocation0 [shape = 'u32[]', space=smem, size = 0x4, offset = 0x4, fixed_abs, tag = 'smem constant byte address 0x4 - core index']
  #allocation1 [shape = 'u32[72,128]{1,0:T(1,128)}', space=vmem, size = 0x9000, scoped, tag = 'internal scratch']
  #allocation2 [shape = 'f32[8,1,128]{2,1,0:T(1,128)}', space=vmem, size = 0x1000, scoped, tag = 'scratch operand']
  #allocation3 [shape = 'f32[8,3,128]{2,1,0:T(4,128)}', space=vmem, size = 0x4000, scoped, tag = 'scratch operand']
  #allocation4 [shape = 's32[8,3,128]{2,1,0:T(4,128)}', space=vmem, size = 0x4000, scoped, tag = 'scratch operand']
  #allocation5 [shape = 'f32[1,8]{1,0:T(1,128)}', space=vmem, size = 0x200, scoped, tag = 'scratch operand']
  #allocation6 [shape = 's32[1,1]{1,0:T(1,128)}', space=vmem, size = 0x200, scoped, tag = 'scratch operand']
  %s0 = inlined_call_operand.hbm [shape: f32[2,8,4,128], index: 0, kind: input, shape index: {}]
  %s1 = inlined_call_operand.vmem [shape: f32[2,3,128], index: 1, kind: output, shape index: {0}]
  %s2 = inlined_call_operand.vmem [shape: f32[2,3,128], index: 2, kind: output, shape index: {1}]
  %s3 = inlined_call_operand.hbm [shape: s32[2,1,128], index: 3, kind: output, shape index: {2}]
  %4 = xla_tuple %s1, %s2, %s3
  %s5 = sld [smem:[#allocation0]]
  $region68: #{tpu_custom_call.1} parent=0
    _
  %s7 = ssub.s32 1, %s5
  %s8 = scalar_select 0, %s7, %s5
  $region1: #{tpu_custom_call.1} parent=0
    #allocation7 [shape = 'u8[4096]{0}', space=vmem, size = 0x1000, scoped, tag = 'input window, operand 0']
    #allocation8 [shape = 's32[2]{0}', space=sflag, size = 0x8, scoped, tag = 'scoped memory for tpu_custom_call.1']
    #allocation9 [shape = 's32[2]{0}', space=sflag, size = 0x8, scoped, tag = 'scoped memory for tpu_custom_call.1']
    #allocation10 [shape = 'u8[1024]{0}', space=vmem, size = 0x400, scoped, tag = 'output window, operand 2']
    %9 = vsyncpa [#allocation8], 0
    %s10 = scalar_lea.sflag [#allocation8], 1
    %11 = vsyncpa %s10, 0
    %12 = vsyncpa [#allocation9], 0
    %s13 = scalar_lea.sflag [#allocation9], 1
    %14 = vsyncpa %s13, 0
    loop: start=0, step=1, limit=18
    $region2: #{tpu_custom_call.1} parent=1 // loop_pre_header
      _
    $region3: #{tpu_custom_call.1} parent=1 // loop_header
      %s16 = sphi 0, %s20
      %p17 = scmp.ge.s32.totalorder %s16, 18
      %s23 = sphi 0, %s35
      %s24 = sphi 0, %s31
      %s25 = sphi 0, %s23
      %s26 = sphi 0, %s24
      %s27 = sphi 0, %s25
      %s28 = sphi 0, %s26
      %s40 = sphi 0, %s42
      %s43 = sphi 0, %s40
      %s44 = sphi 0, %s43
      %s60 = sphi 0, %s44
      %s66 = sphi 0, %s68
      %s69 = sphi 0, %s66
      %s70 = sphi 0, %s69
      %s86 = sphi 0, %s70
      %s92 = sphi 0, %s94
      %s95 = sphi 0, %s92
      %s96 = sphi 0, %s95
      %s112 = sphi 0, %s96
      %s118 = sphi 0, %s120
      %s121 = sphi 0, %s118
      %s122 = sphi 0, %s121
      %s138 = sphi 0, %s122
    $region4: #{tpu_custom_call.1} parent=1 // loop_header_branch
      %19 = sbr.rel (%p17) target = $region8
    $region5: #{tpu_custom_call.1} parent=1 // loop_body
      %s21 = ssub.s32 %s16, 1
      %s22 = ssub.s32 %s16, 2
      %s29 = sadd.s32 1, %s24
      %p30 = scmp.ge.s32.totalorder %s29, 8
      %s31 = scalar_select %p30, 0, %s29
      %s32 = sadd.s32 1, %s23
      %s33 = scalar_select %p30, %s32, %s23
      %p34 = scmp.ge.s32.totalorder %s33, 2
      %s35 = scalar_select %p34, 0, %s33
      %s36 = ssub.s32 %s23, %s35
      %s37 = ssub.s32 %s24, %s31
      %s38 = sor.u32 %s36, %s37
      %p39 = scmp.eq.s32.totalorder %s38, 0
      %s41 = sadd.s32 %s40, 1
      %s42 = scalar_select %p39, %s40, %s41
      %p45 = pneg %p39
      %p46 = scmp.eq.s32.totalorder %s16, 15
      %p47 = por %p45, %p46
      %p48 = scmp.ne.s32.totalorder %s40, %s43
      %p49 = scmp.eq.s32.totalorder %s16, 0
      %p50 = por %p48, %p49
      %p51 = scmp.ne.s32.totalorder %s40, %s43
      %p52 = scmp.eq.s32.totalorder %s21, 15
      %p53 = por %p51, %p52
      %p54 = scmp.ne.s32.totalorder %s43, %s44
      %p55 = scmp.eq.s32.totalorder %s21, 0
      %p56 = por %p54, %p55
      %p57 = scmp.ne.s32.totalorder %s43, %s44
      %p58 = scmp.eq.s32.totalorder %s22, 15
      %p59 = por %p57, %p58
      %p61 = scmp.ne.s32.totalorder %s44, %s60
      %p62 = scmp.eq.s32.totalorder %s22, 0
      %p63 = por %p61, %p62
      %s64 = ssub.s32 %s23, %s35
      %p65 = scmp.eq.s32.totalorder %s64, 0
      %s67 = sadd.s32 %s66, 1
      %s68 = scalar_select %p65, %s66, %s67
      %p71 = pneg %p65
      %p72 = scmp.eq.s32.totalorder %s16, 15
      %p73 = por %p71, %p72
      %p74 = scmp.ne.s32.totalorder %s66, %s69
      %p75 = scmp.eq.s32.totalorder %s16, 0
      %p76 = por %p74, %p75
      %p77 = scmp.ne.s32.totalorder %s66, %s69
      %p78 = scmp.eq.s32.totalorder %s21, 15
      %p79 = por %p77, %p78
      %p80 = scmp.ne.s32.totalorder %s69, %s70
      %p81 = scmp.eq.s32.totalorder %s21, 0
      %p82 = por %p80, %p81
      %p83 = scmp.ne.s32.totalorder %s69, %s70
      %p84 = scmp.eq.s32.totalorder %s22, 15
      %p85 = por %p83, %p84
      %p87 = scmp.ne.s32.totalorder %s70, %s86
      %p88 = scmp.eq.s32.totalorder %s22, 0
      %p89 = por %p87, %p88
      %s90 = ssub.s32 %s23, %s35
      %p91 = scmp.eq.s32.totalorder %s90, 0
      %s93 = sadd.s32 %s92, 1
      %s94 = scalar_select %p91, %s92, %s93
      %p97 = pneg %p91
      %p98 = scmp.eq.s32.totalorder %s16, 15
      %p99 = por %p97, %p98
      %p100 = scmp.ne.s32.totalorder %s92, %s95
      %p101 = scmp.eq.s32.totalorder %s16, 0
      %p102 = por %p100, %p101
      %p103 = scmp.ne.s32.totalorder %s92, %s95
      %p104 = scmp.eq.s32.totalorder %s21, 15
      %p105 = por %p103, %p104
      %p106 = scmp.ne.s32.totalorder %s95, %s96
      %p107 = scmp.eq.s32.totalorder %s21, 0
      %p108 = por %p106, %p107
      %p109 = scmp.ne.s32.totalorder %s95, %s96
      %p110 = scmp.eq.s32.totalorder %s22, 15
      %p111 = por %p109, %p110
      %p113 = scmp.ne.s32.totalorder %s96, %s112
      %p114 = scmp.eq.s32.totalorder %s22, 0
      %p115 = por %p113, %p114
      %s116 = ssub.s32 %s23, %s35
      %p117 = scmp.eq.s32.totalorder %s116, 0
      %s119 = sadd.s32 %s118, 1
      %s120 = scalar_select %p117, %s118, %s119
      %p123 = pneg %p117
      %p124 = scmp.eq.s32.totalorder %s16, 15
      %p125 = por %p123, %p124
      %p126 = scmp.ne.s32.totalorder %s118, %s121
      %p127 = scmp.eq.s32.totalorder %s16, 0
      %p128 = por %p126, %p127
      %p129 = scmp.ne.s32.totalorder %s118, %s121
      %p130 = scmp.eq.s32.totalorder %s21, 15
      %p131 = por %p129, %p130
      %p132 = scmp.ne.s32.totalorder %s121, %s122
      %p133 = scmp.eq.s32.totalorder %s21, 0
      %p134 = por %p132, %p133
      %p135 = scmp.ne.s32.totalorder %s121, %s122
      %p136 = scmp.eq.s32.totalorder %s22, 15
      %p137 = por %p135, %p136
      %p139 = scmp.ne.s32.totalorder %s122, %s138
      %p140 = scmp.eq.s32.totalorder %s22, 0
      %p141 = por %p139, %p140
      %p142 = scmp.le.s32.totalorder 1, %s16
      %p143 = scmp.lt.s32.totalorder %s16, 17
      %p144 = pnand %p142, %p143
      %p145 = pneg %p144
      // Predicated region
      $region9: #{tpu_custom_call.1} parent=5 // pred_check
        _
      $region10: #{tpu_custom_call.1} parent=5 // pred_check_branch
        %147 = sbr.rel (%p144) target = $region12
      $region11: #{tpu_custom_call.1} parent=5 // pred_region
        %s148 = ssub.s32 %s16, 1
      $region12: #{tpu_custom_call.1} parent=5 // pred_fallthru
        _
      %p149 = scmp.lt.s32.totalorder %s16, 16
      // Predicated region
      $region13: #{tpu_custom_call.1} parent=5 // pred_check
        %p150 = pneg %p149
      $region14: #{tpu_custom_call.1} parent=5 // pred_check_branch
        %152 = sbr.rel (%p150) target = $region16
      $region15: #{tpu_custom_call.1} parent=5 // pred_region
        // Predicated region
        $region17: #{tpu_custom_call.1} parent=15 // pred_check
          %p153 = pneg %p50
        $region18: #{tpu_custom_call.1} parent=15 // pred_check_branch
          %155 = sbr.rel (%p153) target = $region20
        $region19: #{tpu_custom_call.1} parent=15 // pred_region
          %s156 = sand.u32 %s40, 1
          %s157 = scalar_lea.sflag [#allocation8], %s156
          %s158 = sand.u32 %s40, 1
          %s159 = smul.addr %s158, 4
          %s160 = scalar_lea.vmem [#allocation7], %s159
          %162 = vsyncadd %s157, 0
          %s163 = smul.addr %s23, 8
          %s164 = sadd.s32 %s24, %s163
          %s165 = smul.addr %s164, 4
          %s166 = scalar_lea.hbm %s0, %s165
          %s168 = sshll.u32 %s166, 4
          %s169 = int_to_ptr.hbm [resolvable:$true] %s168
          %s170 = sshll.u32 %s160, 4
          %s171 = int_to_ptr.vmem [resolvable:$true] %s170
          %173 = dma.hbm_to_vmem [thread:$0]  %s169, 64, %s171, %s157
        $region20: #{tpu_custom_call.1} parent=15 // pred_fallthru
          _
      $region16: #{tpu_custom_call.1} parent=5 // pred_fallthru
        _
      %p174 = scmp.le.s32.totalorder 1, %s16
      %p175 = scmp.lt.s32.totalorder %s16, 17
      %p176 = pnand %p174, %p175
      %p177 = pneg %p176
      // Predicated region
      $region21: #{tpu_custom_call.1} parent=5 // pred_check
        _
      $region22: #{tpu_custom_call.1} parent=5 // pred_check_branch
        %179 = sbr.rel (%p176) target = $region24
      $region23: #{tpu_custom_call.1} parent=5 // pred_region
        %s180 = ssub.s32 %s16, 1
        %s181 = sand.u32 %s43, 1
        %s182 = scalar_lea.sflag [#allocation8], %s181
        %s183 = sand.u32 %s43, 1
        %s184 = smul.addr %s183, 4
        %s185 = scalar_lea.vmem [#allocation7], %s184
        // Predicated region
        $region25: #{tpu_custom_call.1} parent=23 // pred_check
          %p186 = pneg %p56
        $region26: #{tpu_custom_call.1} parent=23 // pred_check_branch
          %188 = sbr.rel (%p186) target = $region28
        $region27: #{tpu_custom_call.1} parent=23 // pred_region
          %190 = dma.done %s182, 64
        $region28: #{tpu_custom_call.1} parent=23 // pred_fallthru
          _
        %s191 = sand.u32 %s43, 1
        %s192 = scalar_lea.sflag [#allocation8], %s191
        %s193 = sand.u32 %s43, 1
        %s194 = smul.addr %s193, 4
        %s195 = scalar_lea.vmem [#allocation7], %s194
        %p196 = pneg %p56
        %p197 = pneg %p53
        %p198 = pneg %p82
        %p199 = pneg %p79
        %p200 = scmp.lt.s32.totalorder %s25, 1
        %s201 = scalar_select %p200, %s25, 1
        %s202 = smul.addr %s201, 4
        %s203 = scalar_lea.vmem %s1, %s202
        %p204 = pneg %p108
        %p205 = pneg %p105
        %p206 = scmp.lt.s32.totalorder %s25, 1
        %s207 = scalar_select %p206, %s25, 1
        %s208 = smul.addr %s207, 4
        %s209 = scalar_lea.vmem %s2, %s208
        %p210 = pneg %p134
        %p211 = pneg %p131
        %s212 = sand.u32 %s121, 1
        %s213 = scalar_lea.sflag [#allocation9], %s212
        %s214 = sand.u32 %s121, 1
        %s215 = scalar_lea.vmem [#allocation10], %s214
        %p216 = scmp.lt.s32.totalorder %s25, 1
        %s217 = scalar_select %p216, %s25, 1
        %s218 = smul.addr %s217, 4
        %s219 = scalar_lea.vmem %s1, %s218
        %p220 = scmp.lt.s32.totalorder %s25, 1
        %s221 = scalar_select %p220, %s25, 1
        %s222 = smul.addr %s221, 4
        %s223 = scalar_lea.vmem %s2, %s222
        %v224 = vlaneseq
        %v225 = vand.u32 %v224, 127
        %v226 = vld [vmem:[%s185] sm:$0xf]
        %v227 = vlaneseq
        %v228 = vshrl.u32 %v227, 7
        %vm229 = vcmask 1043456
        %v230 = vsel %vm229, %v226, -inf
        %v231 = vrot.slane %v230, 4
        %v232 = vmax.f32 %v230, %v231
        %v233 = vrot.slane %v232, 2
        %v234 = vmax.f32 %v232, %v233
        %v235 = vrot.slane %v234, 1
        %v236 = vmax.f32 %v234, %v235
        %vm237 = vcmp.eq.f32.partialorder %v226, %v236
        %v238 = vsel %vm237, %v228, 4
        %v239 = vsel %vm229, %v238, 2147483647
        %v240 = vrot.slane %v239, 4
        %vm241 = vcmp.lt.s32.totalorder %v239, %v240
        %v242 = vsel %vm241, %v239, %v240
        %v243 = vrot.slane %v242, 2
        %vm244 = vcmp.lt.s32.totalorder %v242, %v243
        %v245 = vsel %vm244, %v242, %v243
        %v246 = vrot.slane %v245, 1
        %vm247 = vcmp.lt.s32.totalorder %v245, %v246
        %v248 = vsel %vm247, %v245, %v246
        %vm249 = vcmp.eq.s32.totalorder %v228, %v248
        %v250 = vsel %vm249, -inf, %v226
        %v251 = vsel %vm229, %v250, -inf
        %v252 = vrot.slane %v251, 4
        %v253 = vmax.f32 %v251, %v252
        %v254 = vrot.slane %v253, 2
        %v255 = vmax.f32 %v253, %v254
        %v256 = vrot.slane %v255, 1
        %v257 = vmax.f32 %v255, %v256
        %vm258 = vcmp.eq.f32.partialorder %v250, %v257
        %v259 = vsel %vm258, %v228, 4
        %v260 = vsel %vm229, %v259, 2147483647
        %v261 = vrot.slane %v260, 4
        %vm262 = vcmp.lt.s32.totalorder %v260, %v261
        %v263 = vsel %vm262, %v260, %v261
        %v264 = vrot.slane %v263, 2
        %vm265 = vcmp.lt.s32.totalorder %v263, %v264
        %v266 = vsel %vm265, %v263, %v264
        %v267 = vrot.slane %v266, 1
        %vm268 = vcmp.lt.s32.totalorder %v266, %v267
        %v269 = vsel %vm268, %v266, %v267
        %vm270 = vcmp.eq.s32.totalorder %v228, %v269
        %v271 = vsel %vm270, -inf, %v250
        %v272 = vsel %vm229, %v271, -inf
        %v273 = vrot.slane %v272, 4
        %v274 = vmax.f32 %v272, %v273
        %v275 = vrot.slane %v274, 2
        %v276 = vmax.f32 %v274, %v275
        %v277 = vrot.slane %v276, 1
        %v278 = vmax.f32 %v276, %v277
        %vm279 = vcmp.eq.f32.partialorder %v271, %v278
        %v280 = vsel %vm279, %v228, 4
        %v281 = vsel %vm229, %v280, 2147483647
        %v282 = vrot.slane %v281, 4
        %vm283 = vcmp.lt.s32.totalorder %v281, %v282
        %v284 = vsel %vm283, %v281, %v282
        %v285 = vrot.slane %v284, 2
        %vm286 = vcmp.lt.s32.totalorder %v284, %v285
        %v287 = vsel %vm286, %v284, %v285
        %v288 = vrot.slane %v287, 1
        %vm289 = vcmp.lt.s32.totalorder %v287, %v288
        %v290 = vsel %vm289, %v287, %v288
        %vm291 = vcmask 1040384
        %v292 = vsel %vm291, %v236, %v257
        %vm293 = vcmask 1041408
        %v294 = vsel %vm293, %v292, %v278
        %s295 = smul.u32 %s26, 4
        %s296 = scalar_lea.vmem [#allocation3], %s295
        %297 = vst [vmem:[%s296] sm:$0x7] %v294
        %v298 = vsel %vm291, %v248, %v269
        %v299 = vsel %vm293, %v298, %v290
        %s300 = scalar_lea.vmem [#allocation4], %s295
        %301 = vst [vmem:[%s300] sm:$0x7] %v299
        %s302 = scalar_lea.vmem [#allocation2], %s26
        %303 = vst [vmem:[%s302] sm:$0x1] %v236
        %304 = vmax.xlane.f32.xlu0 %v236
        %v305 = vpop.xlane.xlu0 %304
        %v306 = vstv %s26
        %vm307 = vcmp.eq.s32.totalorder %v225, %v306
        %v308 = vld [vmem:[#allocation5] sm:$0x1]
        %v309 = vsel %vm307, %v305, %v308
        %vm310 = vcmask 57344
        %311 = vst.msk [vmem:[#allocation5] sm:$0x1] %vm310, %v309
        %p312 = scmp.eq.s32.totalorder %s26, 7
        // Predicated region
        $region29: #{tpu_custom_call.1} parent=23 // pred_check
          %p313 = pneg %p312
        $region30: #{tpu_custom_call.1} parent=23 // pred_check_branch
          %315 = sbr.rel (%p313) target = $region32
        $region31: #{tpu_custom_call.1} parent=23 // pred_region
          %316 = vst [vmem:[%s215] sm:$0x1] 0
          %317 = vst [vmem:[%s223] sm:$0x7] 0.0
          %318 = vst [vmem:[%s219] sm:$0x7] 0.0
          loop: start=0, step=1, limit=128
          $region33: #{tpu_custom_call.1} parent=31 // loop_pre_header
            _
          $region34: #{tpu_custom_call.1} parent=31 // loop_header
            %s320 = sphi 0, %s324
            %p321 = scmp.ge.s32.totalorder %s320, 128
          $region35: #{tpu_custom_call.1} parent=31 // loop_header_branch
            %323 = sbr.rel (%p321) target = $region39
          $region36: #{tpu_custom_call.1} parent=31 // loop_body
            %v325 = vld [vmem:[#allocation5] sm:$0x1]
            %v326 = vsel %vm310, %v325, -inf
            %327 = vmax.xlane.f32.xlu0 %v326
            %v328 = vpop.xlane.xlu0 %327
            %vm329 = vcmp.eq.f32.partialorder %v325, %v328
            %v330 = vsel %vm329, %v225, 8
            %v331 = vsel %vm310, %v330, 2147483647
            %v332 = vand.u32 %v331, 65535
            %v333 = vshra.s32 %v331, 16
            %v334 = vcvt.s32.f32 %v332
            %v335 = vcvt.s32.f32 %v333
            %336 = vmin.xlane.f32.xlu0 %v335
            %v337 = vpop.xlane.xlu0 %336
            %vm338 = vcmp.eq.f32.partialorder %v335, %v337
            %v339 = vsel %vm338, %v334, inf
            %340 = vmin.xlane.f32.xlu0 %v339
            %v341 = vpop.xlane.xlu0 %340
            %v342 = vcvt.f32.s32 %v341
            %v343 = vcvt.f32.s32 %v337
            %v344 = vshll.u32 %v343, 16
            %v345 = vadd.s32 %v344, %v342
            %vm346 = vcmask 0
            %347 = vst.msk [vmem:[#allocation6] sm:$0x1] %vm346, %v345
            %v348 = vld [vmem:[#allocation6] sm:$0x1]
            %s349 = vtos %v348
            %s350 = scalar_lea.vmem [#allocation2], %s349
            %v351 = vld [vmem:[%s350] sm:$0x1]
            %vm352 = vcmp.eq.f32.partialorder %v351, %v328
            %v353 = vsel %vm352, %v225, 128
            %v354 = vsel %vm291, %v353, 2147483647
            %v355 = vand.u32 %v354, 65535
            %v356 = vshra.s32 %v354, 16
            %v357 = vcvt.s32.f32 %v355
            %v358 = vcvt.s32.f32 %v356
            %359 = vmin.xlane.f32.xlu0 %v358
            %v360 = vpop.xlane.xlu0 %359
            %vm361 = vcmp.eq.f32.partialorder %v358, %v360
            %v362 = vsel %vm361, %v357, inf
            %363 = vmin.xlane.f32.xlu0 %v362
            %v364 = vpop.xlane.xlu0 %363
            %v365 = vcvt.f32.s32 %v364
            %v366 = vcvt.f32.s32 %v360
            %v367 = vshll.u32 %v366, 16
            %v368 = vadd.s32 %v367, %v365
            %vm369 = vcmp.eq.s32.totalorder %v225, %v368
            %s370 = smul.u32 %s349, 4
            %s371 = scalar_lea.vmem [#allocation3], %s370
            %v372 = vld [vmem:[%s371] sm:$0x7]
            %s373 = scalar_lea.vmem [#allocation4], %s370
            %v374 = vld [vmem:[%s373] sm:$0x7]
            %v375 = vsel %vm369, 1, 0
            %v376 = vperm.slane %v375, 0
            %vm377 = vcmp.eq.s32.totalorder %v376, 1
            %v378 = vsel %vm377, %v372, -inf
            %vm379 = vcmask 1042432
            %v380 = vsel %vm379, %v378, -inf
            %381 = vmax.xlane.f32.xlu0 %v380
            %v382 = vpop.xlane.xlu0 %381
            %v383 = vcvt.s32.f32 %v374
            %v384 = vsel %vm377, %v383, 0.0
            %v385 = vsel %vm379, %v384, 0.0
            %386 = vadd.xlane.f32.xlu0 %v385
            %v387 = vpop.xlane.xlu0 %386
            %v388 = vmul.u32 %v345, 128
            %v389 = vadd.s32 %v388, %v368
            %v390 = vstv %s320
            %vm391 = vcmp.eq.s32.totalorder %v225, %v390
            %v392 = vld [vmem:[%s215] sm:$0x1]
            %v393 = vsel %vm391, %v389, %v392
            %394 = vst [vmem:[%s215] sm:$0x1] %v393
            %v395 = vld [vmem:[%s223] sm:$0x7]
            %v396 = vsel %vm391, 1, 0
            %vm397 = vcmp.eq.s32.totalorder %v396, 1
            %v398 = vsel %vm397, %v382, %v395
            %399 = vst [vmem:[%s223] sm:$0x7] %v398
            %v400 = vld [vmem:[%s219] sm:$0x7]
            %v401 = vsel %vm397, %v387, %v400
            %402 = vst [vmem:[%s219] sm:$0x7] %v401
            %v403 = vsel %vm369, -inf, %v351
            %404 = vst [vmem:[%s350] sm:$0x1] %v403
            %v405 = vsel %vm291, %v403, -inf
            %406 = vmax.xlane.f32.xlu0 %v405
            %v407 = vpop.xlane.xlu0 %406
            %vm408 = vcmp.eq.s32.totalorder %v225, %v345
            %v409 = vsel %vm408, %v407, %v325
            %410 = vst.msk [vmem:[#allocation5] sm:$0x1] %vm310, %v409
          $region37: #{tpu_custom_call.1} parent=31 // loop_footer
            %s324 = sadd.s32 1, %s320
          $region38: #{tpu_custom_call.1} parent=31 // loop_footer_branch
            %319 = sbr.rel target = $region34
          $region39: #{tpu_custom_call.1} parent=31 // loop_exit
            _
        $region32: #{tpu_custom_call.1} parent=23 // pred_fallthru
          _
        %p411 = scmp.lt.s32.totalorder %s25, 1
        %s412 = scalar_select %p411, %s25, 1
        %s413 = smul.addr %s412, 4
        %s414 = scalar_lea.vmem %s1, %s413
        %p415 = scmp.lt.s32.totalorder %s25, 1
        %s416 = scalar_select %p415, %s25, 1
        %s417 = smul.addr %s416, 4
        %s418 = scalar_lea.vmem %s2, %s417
        %s419 = sand.u32 %s121, 1
        %s420 = scalar_lea.sflag [#allocation9], %s419
        %s421 = sand.u32 %s121, 1
        %s422 = scalar_lea.vmem [#allocation10], %s421
        // Predicated region
        $region40: #{tpu_custom_call.1} parent=23 // pred_check
          %p423 = pneg %p79
        $region41: #{tpu_custom_call.1} parent=23 // pred_check_branch
          %425 = sbr.rel (%p423) target = $region43
        $region42: #{tpu_custom_call.1} parent=23 // pred_region
          _
        $region43: #{tpu_custom_call.1} parent=23 // pred_fallthru
          _
        // Predicated region
        $region44: #{tpu_custom_call.1} parent=23 // pred_check
          %p426 = pneg %p105
        $region45: #{tpu_custom_call.1} parent=23 // pred_check_branch
          %428 = sbr.rel (%p426) target = $region47
        $region46: #{tpu_custom_call.1} parent=23 // pred_region
          _
        $region47: #{tpu_custom_call.1} parent=23 // pred_fallthru
          _
        // Predicated region
        $region48: #{tpu_custom_call.1} parent=23 // pred_check
          %p429 = pneg %p131
        $region49: #{tpu_custom_call.1} parent=23 // pred_check_branch
          %431 = sbr.rel (%p429) target = $region51
        $region50: #{tpu_custom_call.1} parent=23 // pred_region
          %433 = vsyncadd %s420, 0
          %s434 = scalar_lea.hbm %s3, %s25
          %s436 = sshll.u32 %s422, 4
          %s437 = int_to_ptr.vmem [resolvable:$true] %s436
          %s438 = sshll.u32 %s434, 4
          %s439 = int_to_ptr.hbm [resolvable:$true] %s438
          %441 = dma.vmem_to_hbm [thread:$0]  %s437, 16, %s439, %s420
        $region51: #{tpu_custom_call.1} parent=23 // pred_fallthru
          _
      $region24: #{tpu_custom_call.1} parent=5 // pred_fallthru
        _
      %p442 = scmp.le.s32.totalorder 2, %s16
      // Predicated region
      $region52: #{tpu_custom_call.1} parent=5 // pred_check
        %p443 = pneg %p442
      $region53: #{tpu_custom_call.1} parent=5 // pred_check_branch
        %445 = sbr.rel (%p443) target = $region55
      $region54: #{tpu_custom_call.1} parent=5 // pred_region
        %s446 = ssub.s32 %s16, 2
        // Predicated region
        $region56: #{tpu_custom_call.1} parent=54 // pred_check
          %p447 = pneg %p85
        $region57: #{tpu_custom_call.1} parent=54 // pred_check_branch
          %449 = sbr.rel (%p447) target = $region59
        $region58: #{tpu_custom_call.1} parent=54 // pred_region
          %p450 = scmp.lt.s32.totalorder %s27, 1
          %s451 = scalar_select %p450, %s27, 1
          %s452 = smul.addr %s451, 4
          %s453 = scalar_lea.vmem %s1, %s452
        $region59: #{tpu_custom_call.1} parent=54 // pred_fallthru
          _
        // Predicated region
        $region60: #{tpu_custom_call.1} parent=54 // pred_check
          %p454 = pneg %p111
        $region61: #{tpu_custom_call.1} parent=54 // pred_check_branch
          %456 = sbr.rel (%p454) target = $region63
        $region62: #{tpu_custom_call.1} parent=54 // pred_region
          %p457 = scmp.lt.s32.totalorder %s27, 1
          %s458 = scalar_select %p457, %s27, 1
          %s459 = smul.addr %s458, 4
          %s460 = scalar_lea.vmem %s2, %s459
        $region63: #{tpu_custom_call.1} parent=54 // pred_fallthru
          _
        // Predicated region
        $region64: #{tpu_custom_call.1} parent=54 // pred_check
          %p461 = pneg %p137
        $region65: #{tpu_custom_call.1} parent=54 // pred_check_branch
          %463 = sbr.rel (%p461) target = $region67
        $region66: #{tpu_custom_call.1} parent=54 // pred_region
          %s464 = sand.u32 %s122, 1
          %s465 = scalar_lea.sflag [#allocation9], %s464
          %s466 = sand.u32 %s122, 1
          %s467 = scalar_lea.vmem [#allocation10], %s466
          %469 = dma.done %s465, 16
        $region67: #{tpu_custom_call.1} parent=54 // pred_fallthru
          _
      $region55: #{tpu_custom_call.1} parent=5 // pred_fallthru
        _
    $region6: #{tpu_custom_call.1} parent=1 // loop_footer
      %s20 = sadd.s32 1, %s16
    $region7: #{tpu_custom_call.1} parent=1 // loop_footer_branch
      %15 = sbr.rel target = $region3
    $region8: #{tpu_custom_call.1} parent=1 // loop_exit
      _
    %470 = vsyncpa [#allocation8], 1
    %s471 = scalar_lea.sflag [#allocation8], 1
    %472 = vsyncpa %s471, 1
    %473 = vsyncpa [#allocation9], 1
    %s474 = scalar_lea.sflag [#allocation9], 1
    %475 = vsyncpa %s474, 1

</llo_original>
